<compile_context>
chip_gen: v6e
topology: v6e:2x2x1
jax: 0.10.0
libtpu: 0.0.40
codegen_flags: <defaults>
</compile_context>

<pallas_src>
import jax
import jax.numpy as jnp
from jax.experimental import pallas as pl
from jax.experimental.pallas import tpu as pltpu

block_size = 8
n_embd = 32
vocab_size = 65  # tiny-shakespeare-sized char vocab (deterministic synthetic choice)


def _round_up(x, m):
    return ((x + m - 1) // m) * m


def bigram_kernel(ids_ref, e_ref, out_ref):
    """Fused gather-matmul.

    ids_ref: (tile_bt, 2) int32; column 0 = token id, column 1 = V + position.
    e_ref:   (Kp, Vp) f32 folded logits table ([tok;pos] @ w.T, bias in pos rows).
    out_ref: (tile_bt, Vp) f32 logits (lane-dense, padded vocab).
    """
    tile_bt = ids_ref.shape[0]
    kp = e_ref.shape[0]
    tok = ids_ref[:, 0:1]                                  # (tile_bt, 1)
    pos = ids_ref[:, 1:2]                                  # (tile_bt, 1)
    iota_k = jax.lax.broadcasted_iota(jnp.int32, (tile_bt, kp), 1)
    # Two-hot rows: token column in [0, V), position column in [V, V + T).
    # The two ranges are disjoint, so OR == sum of the two one-hots.
    twohot = ((iota_k == tok) | (iota_k == pos)).astype(jnp.float32)
    out_ref[...] = jnp.dot(twohot, e_ref[...], preferred_element_type=jnp.float32)


def _pallas_logits(ids_p, e_table, tile_bt):
    BTp = ids_p.shape[0]
    Kp, Vp = e_table.shape
    grid = (BTp // tile_bt,)
    return pl.pallas_call(
        bigram_kernel,
        out_shape=jax.ShapeDtypeStruct((BTp, Vp), jnp.float32),
        grid=grid,
        in_specs=[
            pl.BlockSpec((tile_bt, 2), lambda i: (i, 0)),
            pl.BlockSpec((Kp, Vp), lambda i: (0, 0)),   # E stays VMEM-resident
        ],
        out_specs=pl.BlockSpec((tile_bt, Vp), lambda i: (i, 0)),
        compiler_params=pltpu.CompilerParams(
            dimension_semantics=("parallel",)),
    )(ids_p, e_table)


def bigram_forward(idx, tok_table, pos_table, w, b, targets=None):
    """Matches BigramLanguageModel.forward: returns (logits, loss).

    If targets is None: logits has shape (B, T, V), loss is None.
    If targets given:   logits is flattened to (B*T, V) (as in PyTorch) and
                        loss is the mean cross-entropy.
    """
    B, T = idx.shape
    BT = B * T
    V, D = tok_table.shape

    Vp = _round_up(V, 128)          # lane-dense padded vocab
    Kp = _round_up(V + T, 128)      # padded two-hot / E-table row count

    # --- one-time weight folding (wrapper-side, pure JAX) -----------------
    # E[:V]    = tok_table @ w.T          (contract over d; no explicit transpose)
    # E[V:V+T] = pos_table[:T] @ w.T + b  (lm_head bias folded into position rows)
    tok_logits = jnp.einsum("vd,ud->vu", tok_table, w)
    pos_logits = jnp.einsum("td,ud->tu", pos_table[:T], w) + b[None, :]
    e_table = jnp.pad(
        jnp.concatenate([tok_logits, pos_logits], axis=0).astype(jnp.float32),
        ((0, Kp - (V + T)), (0, Vp - V)))

    # --- flatten / pad the (B*T) row axis ---------------------------------
    tile_bt = 512 if BT >= 512 else _round_up(BT, 8)
    BTp = _round_up(BT, tile_bt)

    idx_flat = idx.reshape(BT).astype(jnp.int32)
    pos_flat = jnp.broadcast_to(
        jnp.arange(T, dtype=jnp.int32), (B, T)).reshape(BT) + V  # shifted into E rows
    ids = jnp.stack([idx_flat, pos_flat], axis=1)                # (BT, 2)
    # Pad rows point at (token 0, pos row V); junk logits are sliced off below.
    ids_p = jnp.full((BTp, 2), V, jnp.int32).at[:BT].set(ids)

    logits_pad = _pallas_logits(ids_p, e_table, tile_bt)  # (BTp, Vp)
    logits_flat = logits_pad[:BT, :V]                     # (BT, V)

    if targets is None:
        return logits_flat.reshape(B, T, V), None

    # Cross-entropy (glue math on the kernel-produced logits, as in PyTorch).
    tgt = targets.reshape(BT)
    lse = jax.nn.logsumexp(logits_flat, axis=-1)
    picked = jnp.take_along_axis(logits_flat, tgt[:, None], axis=-1)[:, 0]
    loss = jnp.mean(lse - picked)
    return logits_flat, loss

# TODO(synk): generate() (autoregressive sampling with torch.multinomial) is a
# host-side Python loop over this forward; not a kernel, so not implemented here.


def _reference_forward(idx, tok_table, pos_table, w, b):
    B, T = idx.shape
    tok_emb = tok_table[idx]                     # (B, T, D)
    pos_emb = pos_table[jnp.arange(T)]           # (T, D)
    x = tok_emb + pos_emb[None, :, :]
    return jnp.einsum("btd,vd->btv", x, w) + b   # (B, T, V)


if __name__ == "__main__":
    key = jax.random.PRNGKey(0)
    k_tok, k_pos, k_w, k_b, k_idx, k_tgt = jax.random.split(key, 6)

    # Deterministic parameter init (PyTorch-like distributions).
    tok_table = jax.random.normal(k_tok, (vocab_size, n_embd), dtype=jnp.float32)
    pos_table = jax.random.normal(k_pos, (block_size, n_embd), dtype=jnp.float32)
    bound = 1.0 / (n_embd ** 0.5)
    w = jax.random.uniform(k_w, (vocab_size, n_embd), jnp.float32, -bound, bound)
    b = jax.random.uniform(k_b, (vocab_size,), jnp.float32, -bound, bound)

    B, T = 2, block_size
    idx = jax.random.randint(k_idx, (B, T), 0, vocab_size, dtype=jnp.int32)
    targets = jax.random.randint(k_tgt, (B, T), 0, vocab_size, dtype=jnp.int32)

    # targets=None path
    logits, loss = bigram_forward(idx, tok_table, pos_table, w, b, targets=None)
    logits = jax.block_until_ready(logits)
    assert logits.shape == (B, T, vocab_size) and loss is None

    # Check against a pure-JAX reference.
    ref = _reference_forward(idx, tok_table, pos_table, w, b)
    assert jnp.allclose(logits, ref, atol=1e-4, rtol=1e-4), "logits mismatch"

    # Short-sequence path (T < block_size, as during generation).
    idx_short = idx[:, :3]
    logits_s, _ = bigram_forward(idx_short, tok_table, pos_table, w, b, targets=None)
    logits_s = jax.block_until_ready(logits_s)
    ref_s = _reference_forward(idx_short, tok_table, pos_table, w, b)
    assert jnp.allclose(logits_s, ref_s, atol=1e-4, rtol=1e-4), "short-seq mismatch"

    # targets path (loss)
    logits_flat, loss = bigram_forward(idx, tok_table, pos_table, w, b, targets=targets)
    loss = jax.block_until_ready(loss)
    assert logits_flat.shape == (B * T, vocab_size)
    assert jnp.isfinite(loss)

    print("KERNEL_OK")
</pallas_src>

<mosaic_0001>
module attributes {stable_mosaic.version = 11 : i64} {
  func.func @bigram_kernel(%arg0: i32, %arg1: memref<16x2xi32, #tpu.memory_space<vmem>>, %arg2: memref<128x128xf32, #tpu.memory_space<vmem>>, %arg3: memref<16x128xf32, #tpu.memory_space<vmem>>) attributes {dimension_semantics = [#tpu.dimension_semantics<parallel>], iteration_bounds = array<i64: 1>, scalar_prefetch = 0 : i64, scratch_operands = 0 : i64, tpu.core_type = #tpu.core_type<tc>, window_params = [{transform_indices = @transform_0, window_bounds = array<i64: 16, 2>}, {pipeline_mode = #tpu.pipeline_mode<synchronous>, transform_indices = @transform_1, window_bounds = array<i64: 128, 128>}, {transform_indices = @transform_2, window_bounds = array<i64: 16, 128>}]} {
    %c0 = arith.constant 0 : index
    %c0_0 = arith.constant 0 : index
    %0 = vector.load %arg1[%c0, %c0_0] : memref<16x2xi32, #tpu.memory_space<vmem>>, vector<16x1xi32>
    %c0_1 = arith.constant 0 : index
    %c1 = arith.constant 1 : index
    %1 = vector.load %arg1[%c0_1, %c1] : memref<16x2xi32, #tpu.memory_space<vmem>>, vector<16x1xi32>
    %2 = tpu.iota {dimensions = array<i32: 1>} : vector<16x128xi32>
    %3 = vector.broadcast %0 : vector<16x1xi32> to vector<16x128xi32>
    %4 = arith.cmpi eq, %2, %3 : vector<16x128xi32>
    %5 = vector.broadcast %1 : vector<16x1xi32> to vector<16x128xi32>
    %6 = arith.cmpi eq, %2, %5 : vector<16x128xi32>
    %7 = arith.ori %4, %6 : vector<16x128xi1>
    %8 = arith.extui %7 : vector<16x128xi1> to vector<16x128xi32>
    %9 = arith.sitofp %8 : vector<16x128xi32> to vector<16x128xf32>
    %c0_2 = arith.constant 0 : index
    %c0_3 = arith.constant 0 : index
    %10 = vector.load %arg2[%c0_2, %c0_3] : memref<128x128xf32, #tpu.memory_space<vmem>>, vector<128x128xf32>
    %cst = arith.constant dense<0.000000e+00> : vector<16x128xf32>
    %11 = tpu.matmul %9, %10, %cst {dimension_numbers = #tpu.dot_dimension_numbers<[1], [0], [0], [1], [0, 0, 1, 1], [], []>} : vector<16x128xf32>, vector<128x128xf32>, vector<16x128xf32> -> vector<16x128xf32>
    %c0_4 = arith.constant 0 : index
    %c0_5 = arith.constant 0 : index
    %12 = vector.load %arg3[%c0_4, %c0_5] : memref<16x128xf32, #tpu.memory_space<vmem>>, vector<16x128xf32>
    tpu.vector_store %arg3[%c0_4, %c0_5], %11 {strides = array<i32>} : memref<16x128xf32, #tpu.memory_space<vmem>>, vector<16x128xf32>,
    return
  }
  func.func @transform_0(%arg0: i32) -> (i32, i32) {
    %c0_i32 = arith.constant 0 : i32
    %c0_i32_0 = arith.constant 0 : i32
    return %arg0, %c0_i32 : i32, i32
  }
  func.func @transform_1(%arg0: i32) -> (i32, i32) {
    %c0_i32 = arith.constant 0 : i32
    %c0_i32_0 = arith.constant 0 : i32
    %c0_i32_1 = arith.constant 0 : i32
    return %c0_i32, %c0_i32_0 : i32, i32
  }
  func.func @transform_2(%arg0: i32) -> (i32, i32) {
    %c0_i32 = arith.constant 0 : i32
    %c0_i32_0 = arith.constant 0 : i32
    return %arg0, %c0_i32 : i32, i32
  }
}

</mosaic_0001>

<llo_original>
// kernel: tpu_custom_call.1
$region0: #{tpu_custom_call.1}
  #allocation0 [shape = 'u32[]', space=smem, size = 0x4, offset = 0x4, fixed_abs, tag = 'smem constant byte address 0x4 - core index']
  #allocation1 [shape = 'u32[144,128]{1,0:T(1,128)}', space=vmem, size = 0x12000, scoped, tag = 'internal scratch']
  %s0 = inlined_call_operand.vmem [shape: s32[16,2], index: 0, kind: input, shape index: {}]
  %s1 = inlined_call_operand.hbm [shape: f32[128,128], index: 1, kind: input, shape index: {}]
  %s2 = inlined_call_operand.hbm [shape: f32[16,128], index: 2, kind: output, shape index: {}]
  %s3 = sld [smem:[#allocation0]]
  $region22: #{tpu_custom_call.1} parent=0
    _
  %s5 = ssub.s32 1, %s3
  %s6 = scalar_select 0, %s5, %s3
  $region1: #{tpu_custom_call.1} parent=0
    #allocation2 [shape = 'u8[65536]{0}', space=vmem, size = 0x10000, scoped, tag = 'input window, operand 1, single buffered']
    #allocation3 [shape = 's32[1]{0}', space=sflag, size = 0x4, scoped, tag = 'scoped memory for tpu_custom_call.1']
    #allocation4 [shape = 's32[1]{0}', space=sflag, size = 0x4, scoped, tag = 'scoped memory for tpu_custom_call.1']
    #allocation5 [shape = 'u8[8192]{0}', space=vmem, size = 0x2000, scoped, tag = 'output window, operand 0, single buffered']
    %7 = vsyncpa [#allocation3], 0
    %8 = vsyncpa [#allocation4], 0
    // Predicated region
    $region2: #{tpu_custom_call.1} parent=1 // pred_check
      _
    $region3: #{tpu_custom_call.1} parent=1 // pred_check_branch
      %10 = sbr.rel (0) target = $region5
    $region4: #{tpu_custom_call.1} parent=1 // pred_region
      _
    $region5: #{tpu_custom_call.1} parent=1 // pred_fallthru
      _
    // Predicated region
    $region6: #{tpu_custom_call.1} parent=1 // pred_check
      _
    $region7: #{tpu_custom_call.1} parent=1 // pred_check_branch
      %12 = sbr.rel (0) target = $region9
    $region8: #{tpu_custom_call.1} parent=1 // pred_region
      %s14 = ssub.s32 2048, 2048
      %15 = vsyncadd [#allocation3], %s14
      %s16 = sshll.u32 [#allocation2], 4
      %s17 = int_to_ptr.vmem [resolvable:$true] %s16
      %22 = dma.hbm_to_vmem [thread:$0]  %s1, 2048, %s17, [#allocation3], 128, 128, 8
    $region9: #{tpu_custom_call.1} parent=1 // pred_fallthru
      _
    // Predicated region
    $region10: #{tpu_custom_call.1} parent=1 // pred_check
      _
    $region11: #{tpu_custom_call.1} parent=1 // pred_check_branch
      %24 = sbr.rel (0) target = $region13
    $region12: #{tpu_custom_call.1} parent=1 // pred_region
      %25 = dma.done [#allocation3], 2048
    $region13: #{tpu_custom_call.1} parent=1 // pred_fallthru
      _
    %v26 = vld [vmem:[%s0] sm:$0xff]
    %v27 = vld [vmem:[%s0 + $0x8] sm:$0xff]
    %v28 = vlaneseq
    %v29 = vand.u32 %v28, 127
    %30 = vset.pattern.permute.xlu0 0
    %31 = vperm.xlu0 %30, %v26
    %v32 = vpop.permute.xlu0 %31
    %33 = vset.pattern.permute.xlu0 0
    %34 = vperm.xlu0 %33, %v27
    %v35 = vpop.permute.xlu0 %34
    %vm36 = vcmp.eq.s32.totalorder %v29, %v32
    %vm37 = vcmp.eq.s32.totalorder %v29, %v35
    %38 = vset.pattern.permute.xlu0 1
    %39 = vperm.xlu0 %38, %v26
    %v40 = vpop.permute.xlu0 %39
    %41 = vset.pattern.permute.xlu0 1
    %42 = vperm.xlu0 %41, %v27
    %v43 = vpop.permute.xlu0 %42
    %vm44 = vcmp.eq.s32.totalorder %v29, %v40
    %vm45 = vcmp.eq.s32.totalorder %v29, %v43
    %vm46 = vmor %vm36, %vm44
    %vm47 = vmor %vm37, %vm45
    %v48 = vsel %vm46, 1, 0
    %v49 = vsel %vm47, 1, 0
    %v50 = vcvt.s32.f32 %v48
    %v51 = vcvt.s32.f32 %v49
    %v52 = vld [vmem:[#allocation2] sm:$0xff]
    %v53 = vld [vmem:[#allocation2 + $0x8] sm:$0xff]
    %v54 = vld [vmem:[#allocation2 + $0x10] sm:$0xff]
    %v55 = vld [vmem:[#allocation2 + $0x18] sm:$0xff]
    %v56 = vld [vmem:[#allocation2 + $0x20] sm:$0xff]
    %v57 = vld [vmem:[#allocation2 + $0x28] sm:$0xff]
    %v58 = vld [vmem:[#allocation2 + $0x30] sm:$0xff]
    %v59 = vld [vmem:[#allocation2 + $0x38] sm:$0xff]
    %v60 = vld [vmem:[#allocation2 + $0x40] sm:$0xff]
    %v61 = vld [vmem:[#allocation2 + $0x48] sm:$0xff]
    %v62 = vld [vmem:[#allocation2 + $0x50] sm:$0xff]
    %v63 = vld [vmem:[#allocation2 + $0x58] sm:$0xff]
    %v64 = vld [vmem:[#allocation2 + $0x60] sm:$0xff]
    %v65 = vld [vmem:[#allocation2 + $0x68] sm:$0xff]
    %v66 = vld [vmem:[#allocation2 + $0x70] sm:$0xff]
    %v67 = vld [vmem:[#allocation2 + $0x78] sm:$0xff]
    %68 = vmatprep.subr.mxu0 0.0
    %69 = vmatpush1.msra.mxu0 %v67
    %70 = vmatprep.subr.mxu0 0.0
    %71 = vmatpush1.msra.mxu0 %v66
    %72 = vmatprep.subr.mxu0 0.0
    %73 = vmatpush1.msra.mxu0 %v65
    %74 = vmatprep.subr.mxu0 0.0
    %75 = vmatpush1.msra.mxu0 %v64
    %76 = vmatprep.subr.mxu0 0.0
    %77 = vmatpush1.msra.mxu0 %v63
    %78 = vmatprep.subr.mxu0 0.0
    %79 = vmatpush1.msra.mxu0 %v62
    %80 = vmatprep.subr.mxu0 0.0
    %81 = vmatpush1.msra.mxu0 %v61
    %82 = vmatprep.subr.mxu0 0.0
    %83 = vmatpush1.msra.mxu0 %v60
    %84 = vmatprep.subr.mxu0 0.0
    %85 = vmatpush1.msra.mxu0 %v59
    %86 = vmatprep.subr.mxu0 0.0
    %87 = vmatpush1.msra.mxu0 %v58
    %88 = vmatprep.subr.mxu0 0.0
    %89 = vmatpush1.msra.mxu0 %v57
    %90 = vmatprep.subr.mxu0 0.0
    %91 = vmatpush1.msra.mxu0 %v56
    %92 = vmatprep.subr.mxu0 0.0
    %93 = vmatpush1.msra.mxu0 %v55
    %94 = vmatprep.subr.mxu0 0.0
    %95 = vmatpush1.msra.mxu0 %v54
    %96 = vmatprep.subr.mxu0 0.0
    %97 = vmatpush1.msra.mxu0 %v53
    %98 = vmatprep.subr.mxu0 0.0
    %99 = vmatpush1.msra.mxu0 %v52
    %100 = vmatprep.subr.mxu0 0.0
    %101 = vmatpush2.msra.mxu0 0.0
    %102 = vmatprep.subr.mxu0 0.0
    %103 = vmatpush2.msra.mxu0 0.0
    %104 = vmatprep.subr.mxu0 0.0
    %105 = vmatpush2.msra.mxu0 0.0
    %106 = vmatprep.subr.mxu0 0.0
    %107 = vmatpush2.msra.mxu0 0.0
    %108 = vmatprep.subr.mxu0 0.0
    %109 = vmatpush2.msra.mxu0 0.0
    %110 = vmatprep.subr.mxu0 0.0
    %111 = vmatpush2.msra.mxu0 0.0
    %112 = vmatprep.subr.mxu0 0.0
    %113 = vmatpush2.msra.mxu0 0.0
    %114 = vmatprep.subr.mxu0 0.0
    %115 = vmatpush2.msra.mxu0 0.0
    %116 = vmatprep.subr.mxu0 0.0
    %117 = vmatpush2.msra.mxu0 0.0
    %118 = vmatprep.subr.mxu0 0.0
    %119 = vmatpush2.msra.mxu0 0.0
    %120 = vmatprep.subr.mxu0 0.0
    %121 = vmatpush2.msra.mxu0 0.0
    %122 = vmatprep.subr.mxu0 0.0
    %123 = vmatpush2.msra.mxu0 0.0
    %124 = vmatprep.subr.mxu0 0.0
    %125 = vmatpush2.msra.mxu0 0.0
    %126 = vmatprep.subr.mxu0 0.0
    %127 = vmatpush2.msra.mxu0 0.0
    %128 = vmatprep.subr.mxu0 0.0
    %129 = vmatpush2.msra.mxu0 0.0
    %130 = vmatprep.subr.mxu0 0.0
    %131 = vmatpush2.msra.mxu0 0.0
    %132 = vmatprep.mubr.f32.mxu0 0.0
    %133 = vmatmul.mubr.f32.gmra.mxu0 %v50
    %v134 = vpop.f32.mrf.mxu0
    %v135 = vadd.f32 0.0, %v134
    %v136 = vpop.f32.mrf.mxu0
    %137 = vmatprep.mubr.f32.mxu0 0.0
    %138 = vmatmul.mubr.f32.gmra.mxu0 %v51
    %v139 = vpop.f32.mrf.mxu0
    %v140 = vadd.f32 0.0, %v139
    %v141 = vpop.f32.mrf.mxu0
    %142 = vdwg.mxu0
    %143 = vst [vmem:[#allocation5] sm:$0xff] %v135
    %144 = vst [vmem:[#allocation5 + $0x8] sm:$0xff] %v140
    // Predicated region
    $region14: #{tpu_custom_call.1} parent=1 // pred_check
      _
    $region15: #{tpu_custom_call.1} parent=1 // pred_check_branch
      %146 = sbr.rel (0) target = $region17
    $region16: #{tpu_custom_call.1} parent=1 // pred_region
      %s148 = ssub.s32 256, 256
      %149 = vsyncadd [#allocation4], %s148
      %s150 = sshll.u32 [#allocation5], 4
      %s151 = int_to_ptr.vmem [resolvable:$true] %s150
      %156 = dma.vmem_to_hbm [thread:$0]  %s151, 256, %s2, [#allocation4], 128, 128, 8
    $region17: #{tpu_custom_call.1} parent=1 // pred_fallthru
      _
    // Predicated region
    $region18: #{tpu_custom_call.1} parent=1 // pred_check
      _
    $region19: #{tpu_custom_call.1} parent=1 // pred_check_branch
      %158 = sbr.rel (0) target = $region21
    $region20: #{tpu_custom_call.1} parent=1 // pred_region
      %159 = dma.done [#allocation4], 256
    $region21: #{tpu_custom_call.1} parent=1 // pred_fallthru
      _
    %160 = vsyncpa [#allocation3], 1
    %161 = vsyncpa [#allocation4], 1

</llo_original>
